<compile_context>
chip_gen: v5e
topology: v5e:2x2
jax: 0.10.0
libtpu: 0.0.40
codegen_flags: <defaults>
</compile_context>

<pallas_src>
import functools

import jax
import jax.numpy as jnp
from jax.experimental import pallas as pl
from jax.experimental.pallas import tpu as pltpu

DIM = 128  # ResML default dim


def _silu_f32(h):
    # SiLU in f32; the exp goes to the EUP slot (free next to the MXU/VPU work).
    return h * (1.0 / (1.0 + jnp.exp(-h)))


def resml_kernel(x_ref, w1_ref, b1_ref, w2_ref, b2_ref, y_ref):
    x = x_ref[...].astype(jnp.float32)                                 # (tm, d) residual in f32
    # bf16 operands into the MXU, f32 accumulation.
    h = jnp.dot(x.astype(jnp.bfloat16), w1_ref[...],
                preferred_element_type=jnp.float32) + b1_ref[...]
    h = _silu_f32(h)                                                   # f32 epilogue
    y = jnp.dot(h.astype(jnp.bfloat16), w2_ref[...],
                preferred_element_type=jnp.float32) + b2_ref[...]
    y_ref[...] = (y + x).astype(y_ref.dtype)                           # residual


def _choose_block_rows(m, max_block_rows):
    """Row-tile size: <= max_block_rows, multiple of 8, and an even grid step
    count (>= 2) so v7x's two TensorCores get balanced 'parallel' work."""
    n = max(2, pl.cdiv(m, max_block_rows))
    if n % 2:
        n += 1
    bm = pl.cdiv(m, n)
    return max(8, pl.cdiv(bm, 8) * 8)


@functools.partial(jax.jit, static_argnames=("max_block_rows", "gridless_rows"))
def resml(x, w1, b1, w2, b2, *, max_block_rows=1024, gridless_rows=256):
    """ResML forward. x: (..., DIM); w1/w2: (DIM, DIM) stored (in, out); b1/b2: (1, DIM)."""
    orig_shape = x.shape
    d = orig_shape[-1]
    x2 = x.reshape(-1, d)
    m = x2.shape[0]

    # bf16 MXU operands; biases / epilogue stay f32.
    w1b = w1.astype(jnp.bfloat16)
    w2b = w2.astype(jnp.bfloat16)

    if m <= gridless_rows:
        # Small problem: one VMEM block, no grid / pipeline machinery.
        y = pl.pallas_call(
            resml_kernel,
            out_shape=jax.ShapeDtypeStruct((m, d), x.dtype),
        )(x2, w1b, b1, w2b, b2)
        return y.reshape(orig_shape)

    # Large batch: tile the row axis (un-padded; Pallas masks the ragged tail)
    # and shard the row blocks across cores ("parallel").
    bm = _choose_block_rows(m, max_block_rows)
    y = pl.pallas_call(
        resml_kernel,
        out_shape=jax.ShapeDtypeStruct((m, d), x.dtype),
        grid_spec=pl.GridSpec(
            grid=(pl.cdiv(m, bm),),
            in_specs=[
                pl.BlockSpec((bm, d), lambda i: (i, 0)),   # x row tile
                pl.BlockSpec((d, d), lambda i: (0, 0)),    # w1 (resident)
                pl.BlockSpec((1, d), lambda i: (0, 0)),    # b1
                pl.BlockSpec((d, d), lambda i: (0, 0)),    # w2 (resident)
                pl.BlockSpec((1, d), lambda i: (0, 0)),    # b2
            ],
            out_specs=pl.BlockSpec((bm, d), lambda i: (i, 0)),
        ),
        compiler_params=pltpu.CompilerParams(
            dimension_semantics=("parallel",)),
    )(x2, w1b, b1, w2b, b2)
    return y.reshape(orig_shape)


def resml_reference_f32(x, w1, b1, w2, b2):
    """Pure-JAX f32 HIGHEST-precision reference mirroring the PyTorch forward."""
    hi = jax.lax.Precision.HIGHEST
    h = jax.nn.silu(jnp.dot(x, w1, precision=hi) + b1)
    return jnp.dot(h, w2, precision=hi) + b2 + x


def resml_reference_bf16(x, w1, b1, w2, b2):
    """Reference matching the kernel's numerics: bf16 MXU operands, f32 accum/epilogue."""
    h = jnp.dot(x.astype(jnp.bfloat16), w1.astype(jnp.bfloat16),
                preferred_element_type=jnp.float32) + b1
    h = _silu_f32(h)
    y = jnp.dot(h.astype(jnp.bfloat16), w2.astype(jnp.bfloat16),
                preferred_element_type=jnp.float32) + b2
    return y + x


if __name__ == "__main__":
    key = jax.random.PRNGKey(0)
    k_w1, k_b1, k_w2, k_b2, k_x, k_xb = jax.random.split(key, 6)

    dim = DIM
    # Deterministic PyTorch-style init:
    #   res[0].weight ~ N(0, 0.5*sqrt(6/dim)); remaining params default Linear
    #   uniform(-1/sqrt(fan_in), 1/sqrt(fan_in)). Weights stored (in, out).
    std = 0.5 * (6.0 / dim) ** 0.5
    bound = 1.0 / dim ** 0.5
    w1 = std * jax.random.normal(k_w1, (dim, dim), jnp.float32)
    b1 = jax.random.uniform(k_b1, (1, dim), jnp.float32, -bound, bound)
    w2 = jax.random.uniform(k_w2, (dim, dim), jnp.float32, -bound, bound)
    b2 = jax.random.uniform(k_b2, (1, dim), jnp.float32, -bound, bound)

    # Small input consistent with the module: (batch=2, seq=8, dim=128) -> gridless path.
    x = jax.random.normal(k_x, (2, 8, dim), jnp.float32)
    y = jax.block_until_ready(resml(x, w1, b1, w2, b2))
    assert y.shape == x.shape
    x2 = x.reshape(-1, dim)
    y2 = y.reshape(-1, dim)
    # Tight check vs the bf16-matmul-matched reference (kernel numerics).
    assert jnp.allclose(y2, resml_reference_bf16(x2, w1, b1, w2, b2), atol=5e-3, rtol=5e-3)
    # Loose semantic check vs the f32 HIGHEST reference (bf16 MXU operands).
    assert jnp.allclose(y2, resml_reference_f32(x2, w1, b1, w2, b2), atol=1.5e-1, rtol=5e-2)

    # Larger ragged batch -> tiled "parallel" path with a masked partial last block,
    # no host-side pad/slice (1043 rows, block_rows=528, grid=(2,)).
    x_big = jax.random.normal(k_xb, (1, 1043, dim), jnp.float32)
    y_big = jax.block_until_ready(resml(x_big, w1, b1, w2, b2))
    assert y_big.shape == x_big.shape
    xb2 = x_big.reshape(-1, dim)
    yb2 = y_big.reshape(-1, dim)
    assert jnp.allclose(yb2, resml_reference_bf16(xb2, w1, b1, w2, b2), atol=5e-3, rtol=5e-3)
    assert jnp.allclose(yb2, resml_reference_f32(xb2, w1, b1, w2, b2), atol=1.5e-1, rtol=5e-2)

    print("KERNEL_OK")
</pallas_src>

<mosaic_0001>
module attributes {stable_mosaic.version = 11 : i64} {
  func.func @resml_kernel(%arg0: memref<16x128xf32, #tpu.memory_space<vmem>>, %arg1: memref<128x128xbf16, #tpu.memory_space<vmem>>, %arg2: memref<1x128xf32, #tpu.memory_space<vmem>>, %arg3: memref<128x128xbf16, #tpu.memory_space<vmem>>, %arg4: memref<1x128xf32, #tpu.memory_space<vmem>>, %arg5: memref<16x128xf32, #tpu.memory_space<vmem>>) attributes {dimension_semantics = [], scalar_prefetch = 0 : i64, scratch_operands = 0 : i64, tpu.core_type = #tpu.core_type<tc>} {
    %c0 = arith.constant 0 : index
    %c0_0 = arith.constant 0 : index
    %0 = vector.load %arg0[%c0, %c0_0] : memref<16x128xf32, #tpu.memory_space<vmem>>, vector<16x128xf32>
    %1 = arith.truncf %0 : vector<16x128xf32> to vector<16x128xbf16>
    %c0_1 = arith.constant 0 : index
    %c0_2 = arith.constant 0 : index
    %2 = vector.load %arg1[%c0_1, %c0_2] : memref<128x128xbf16, #tpu.memory_space<vmem>>, vector<128x128xbf16>
    %cst = arith.constant dense<0.000000e+00> : vector<16x128xf32>
    %3 = tpu.matmul %1, %2, %cst {dimension_numbers = #tpu.dot_dimension_numbers<[1], [0], [0], [1], [0, 0, 1, 1], [], []>} : vector<16x128xbf16>, vector<128x128xbf16>, vector<16x128xf32> -> vector<16x128xf32>
    %c0_3 = arith.constant 0 : index
    %c0_4 = arith.constant 0 : index
    %4 = vector.load %arg2[%c0_3, %c0_4] : memref<1x128xf32, #tpu.memory_space<vmem>>, vector<1x128xf32>
    %5 = vector.broadcast %4 : vector<1x128xf32> to vector<16x128xf32>
    %6 = arith.addf %3, %5 : vector<16x128xf32>
    %cst_5 = arith.constant 0.000000e+00 : f32
    %7 = vector.broadcast %cst_5 : f32 to vector<16x128xf32>
    %8 = arith.subf %7, %6 : vector<16x128xf32>
    %9 = math.exp %8 : vector<16x128xf32>
    %cst_6 = arith.constant 1.000000e+00 : f32
    %10 = vector.broadcast %cst_6 : f32 to vector<16x128xf32>
    %11 = arith.addf %10, %9 : vector<16x128xf32>
    %cst_7 = arith.constant 1.000000e+00 : f32
    %12 = vector.broadcast %cst_7 : f32 to vector<16x128xf32>
    %13 = arith.divf %12, %11 : vector<16x128xf32>
    %14 = arith.mulf %6, %13 : vector<16x128xf32>
    %15 = arith.truncf %14 : vector<16x128xf32> to vector<16x128xbf16>
    %c0_8 = arith.constant 0 : index
    %c0_9 = arith.constant 0 : index
    %16 = vector.load %arg3[%c0_8, %c0_9] : memref<128x128xbf16, #tpu.memory_space<vmem>>, vector<128x128xbf16>
    %cst_10 = arith.constant dense<0.000000e+00> : vector<16x128xf32>
    %17 = tpu.matmul %15, %16, %cst_10 {dimension_numbers = #tpu.dot_dimension_numbers<[1], [0], [0], [1], [0, 0, 1, 1], [], []>} : vector<16x128xbf16>, vector<128x128xbf16>, vector<16x128xf32> -> vector<16x128xf32>
    %c0_11 = arith.constant 0 : index
    %c0_12 = arith.constant 0 : index
    %18 = vector.load %arg4[%c0_11, %c0_12] : memref<1x128xf32, #tpu.memory_space<vmem>>, vector<1x128xf32>
    %19 = vector.broadcast %18 : vector<1x128xf32> to vector<16x128xf32>
    %20 = arith.addf %17, %19 : vector<16x128xf32>
    %21 = arith.addf %20, %0 : vector<16x128xf32>
    %c0_13 = arith.constant 0 : index
    %c0_14 = arith.constant 0 : index
    %22 = vector.load %arg5[%c0_13, %c0_14] : memref<16x128xf32, #tpu.memory_space<vmem>>, vector<16x128xf32>
    tpu.vector_store %arg5[%c0_13, %c0_14], %21 {strides = array<i32>} : memref<16x128xf32, #tpu.memory_space<vmem>>, vector<16x128xf32>,
    return
  }
}

</mosaic_0001>

<llo_original>
// kernel: resml.1
$region0: #{resml.1}
  #allocation0 [shape = 'u32[]', space=smem, size = 0x4, offset = 0x4, fixed_abs, tag = 'smem constant byte address 0x4 - core index']
  #allocation1 [shape = 'u32[72,128]{1,0:T(1,128)}', space=vmem, size = 0x9000, scoped, tag = 'internal scratch']
  %s0 = inlined_call_operand.vmem [shape: f32[16,128], index: 0, kind: input, shape index: {}]
  %s1 = inlined_call_operand.vmem [shape: bf16[128,128], index: 1, kind: input, shape index: {}]
  %s2 = inlined_call_operand.vmem [shape: f32[1,128], index: 2, kind: input, shape index: {}]
  %s3 = inlined_call_operand.vmem [shape: bf16[128,128], index: 3, kind: input, shape index: {}]
  %s4 = inlined_call_operand.vmem [shape: f32[1,128], index: 4, kind: input, shape index: {}]
  %s5 = inlined_call_operand.hbm [shape: f32[16,128], index: 5, kind: output, shape index: {}]
  %s6 = sld [smem:[#allocation0]]
  $region30: #{resml.1} parent=0
    _
  %s8 = ssub.s32 1, %s6
  %s9 = scalar_select 0, %s8, %s6
  $region1: #{resml.1} parent=0
    #allocation2 [shape = 'u8[8192]{0}', space=vmem, size = 0x2000, scoped, tag = 'output window, operand 0, single buffered']
    #allocation3 [shape = 's32[1]{0}', space=sflag, size = 0x4, scoped, tag = 'scoped memory for resml.1']
    %10 = vsyncpa [#allocation3], 0
    // Predicated region
    $region2: #{resml.1} parent=1 // pred_check
      _
    $region3: #{resml.1} parent=1 // pred_check_branch
      %12 = sbr.rel (0) target = $region5
    $region4: #{resml.1} parent=1 // pred_region
      _
    $region5: #{resml.1} parent=1 // pred_fallthru
      _
    // Predicated region
    $region6: #{resml.1} parent=1 // pred_check
      _
    $region7: #{resml.1} parent=1 // pred_check_branch
      %14 = sbr.rel (0) target = $region9
    $region8: #{resml.1} parent=1 // pred_region
      _
    $region9: #{resml.1} parent=1 // pred_fallthru
      _
    // Predicated region
    $region10: #{resml.1} parent=1 // pred_check
      _
    $region11: #{resml.1} parent=1 // pred_check_branch
      %16 = sbr.rel (0) target = $region13
    $region12: #{resml.1} parent=1 // pred_region
      _
    $region13: #{resml.1} parent=1 // pred_fallthru
      _
    // Predicated region
    $region14: #{resml.1} parent=1 // pred_check
      _
    $region15: #{resml.1} parent=1 // pred_check_branch
      %18 = sbr.rel (0) target = $region17
    $region16: #{resml.1} parent=1 // pred_region
      _
    $region17: #{resml.1} parent=1 // pred_fallthru
      _
    // Predicated region
    $region18: #{resml.1} parent=1 // pred_check
      _
    $region19: #{resml.1} parent=1 // pred_check_branch
      %20 = sbr.rel (0) target = $region21
    $region20: #{resml.1} parent=1 // pred_region
      _
    $region21: #{resml.1} parent=1 // pred_fallthru
      _
    %v21 = vld [vmem:[%s0] sm:$0xff]
    %v22 = vld [vmem:[%s0 + $0x8] sm:$0xff]
    %v23 = vpack.c.bf16 %v22, %v21
    %v24 = vld [vmem:[%s1] sm:$0xf]
    %v25 = vld [vmem:[%s1 + $0x4] sm:$0xf]
    %v26 = vld [vmem:[%s1 + $0x8] sm:$0xf]
    %v27 = vld [vmem:[%s1 + $0xc] sm:$0xf]
    %v28 = vld [vmem:[%s1 + $0x10] sm:$0xf]
    %v29 = vld [vmem:[%s1 + $0x14] sm:$0xf]
    %v30 = vld [vmem:[%s1 + $0x18] sm:$0xf]
    %v31 = vld [vmem:[%s1 + $0x1c] sm:$0xf]
    %v32 = vld [vmem:[%s1 + $0x20] sm:$0xf]
    %v33 = vld [vmem:[%s1 + $0x24] sm:$0xf]
    %v34 = vld [vmem:[%s1 + $0x28] sm:$0xf]
    %v35 = vld [vmem:[%s1 + $0x2c] sm:$0xf]
    %v36 = vld [vmem:[%s1 + $0x30] sm:$0xf]
    %v37 = vld [vmem:[%s1 + $0x34] sm:$0xf]
    %v38 = vld [vmem:[%s1 + $0x38] sm:$0xf]
    %v39 = vld [vmem:[%s1 + $0x3c] sm:$0xf]
    %v40 = vld [vmem:[%s2] sm:$0x1]
    %v42 = vperm.slane %v40, 0
    %v60 = vunpack.c.l.b16 %v24
    %v61 = vunpack.c.l.b16 %v25
    %v62 = vunpack.c.l.b16 %v26
    %v63 = vunpack.c.l.b16 %v27
    %v64 = vunpack.c.l.b16 %v28
    %v65 = vunpack.c.l.b16 %v29
    %v66 = vunpack.c.l.b16 %v30
    %v67 = vunpack.c.l.b16 %v31
    %v68 = vunpack.c.l.b16 %v32
    %v69 = vunpack.c.l.b16 %v33
    %v70 = vunpack.c.l.b16 %v34
    %v71 = vunpack.c.l.b16 %v35
    %v72 = vunpack.c.l.b16 %v36
    %v73 = vunpack.c.l.b16 %v37
    %v74 = vunpack.c.l.b16 %v38
    %v75 = vunpack.c.l.b16 %v39
    %v76 = vpack.c.b16 %v61, %v60
    %v77 = vpack.c.b16 %v63, %v62
    %v78 = vpack.c.b16 %v65, %v64
    %v79 = vpack.c.b16 %v67, %v66
    %v80 = vpack.c.b16 %v69, %v68
    %v81 = vpack.c.b16 %v71, %v70
    %v82 = vpack.c.b16 %v73, %v72
    %v83 = vpack.c.b16 %v75, %v74
    %92 = vmatpush.bf16.msra.mxu0 %v83
    %93 = vmatpush.bf16.msra.mxu0 %v82
    %94 = vmatpush.bf16.msra.mxu0 %v81
    %95 = vmatpush.bf16.msra.mxu0 %v80
    %96 = vmatpush.bf16.msra.mxu0 %v79
    %97 = vmatpush.bf16.msra.mxu0 %v78
    %98 = vmatpush.bf16.msra.mxu0 %v77
    %99 = vmatpush.bf16.msra.mxu0 %v76
    %100 = vmatmul.bf16.gmra.mxu0 %v23
    %v101 = vpop.f32.mrf.mxu0
    %v102 = vadd.f32 %v42, %v101
    %v103 = vpop.f32.mrf.mxu0
    %v104 = vadd.f32 %v42, %v103
    %105 = vdwg.mxu0
    %v106 = vsub.f32 0.0, %v102
    %v107 = vsub.f32 0.0, %v104
    %v108 = vmul.f32 %v106, 1.442695
    %v109 = vpow.pop %v108
    %v110 = vmul.f32 %v107, 1.442695
    %v111 = vpow.pop %v110
    %v112 = vadd.f32 %v109, 1.0
    %v113 = vadd.f32 %v111, 1.0
    %v114 = vrcp.pop %v112
    %v115 = vmul.f32 %v112, %v114
    %v116 = vsub.f32 1.0, %v115
    %v117 = vmul.f32 %v114, %v116
    %v118 = vadd.f32 %v114, %v117
    %vm119 = vweird.f32 %v112
    %vm120 = vweird.f32 %v114
    %vm121 = vmor %vm119, %vm120
    %v122 = vsel %vm121, %v114, %v118
    %v123 = vand.u32 2147483647, %v112
    %vm124 = vcmp.eq.f32.partialorder %v123, 8.507059e+37
    %v125 = vand.u32 %v112, 2147483648
    %v126 = vor.u32 1.1754944e-38, %v125
    %v127 = vsel %vm124, %v126, %v122
    %v128 = vmul.f32 1.0, %v127
    %v129 = vrcp.pop %v113
    %v130 = vmul.f32 %v113, %v129
    %v131 = vsub.f32 1.0, %v130
    %v132 = vmul.f32 %v129, %v131
    %v133 = vadd.f32 %v129, %v132
    %vm134 = vweird.f32 %v113
    %vm135 = vweird.f32 %v129
    %vm136 = vmor %vm134, %vm135
    %v137 = vsel %vm136, %v129, %v133
    %v138 = vand.u32 2147483647, %v113
    %vm139 = vcmp.eq.f32.partialorder %v138, 8.507059e+37
    %v140 = vand.u32 %v113, 2147483648
    %v141 = vor.u32 1.1754944e-38, %v140
    %v142 = vsel %vm139, %v141, %v137
    %v143 = vmul.f32 1.0, %v142
    %v144 = vmul.f32 %v102, %v128
    %v145 = vmul.f32 %v104, %v143
    %v146 = vpack.c.bf16 %v145, %v144
    %v147 = vld [vmem:[%s3] sm:$0xf]
    %v148 = vld [vmem:[%s3 + $0x4] sm:$0xf]
    %v149 = vld [vmem:[%s3 + $0x8] sm:$0xf]
    %v150 = vld [vmem:[%s3 + $0xc] sm:$0xf]
    %v151 = vld [vmem:[%s3 + $0x10] sm:$0xf]
    %v152 = vld [vmem:[%s3 + $0x14] sm:$0xf]
    %v153 = vld [vmem:[%s3 + $0x18] sm:$0xf]
    %v154 = vld [vmem:[%s3 + $0x1c] sm:$0xf]
    %v155 = vld [vmem:[%s3 + $0x20] sm:$0xf]
    %v156 = vld [vmem:[%s3 + $0x24] sm:$0xf]
    %v157 = vld [vmem:[%s3 + $0x28] sm:$0xf]
    %v158 = vld [vmem:[%s3 + $0x2c] sm:$0xf]
    %v159 = vld [vmem:[%s3 + $0x30] sm:$0xf]
    %v160 = vld [vmem:[%s3 + $0x34] sm:$0xf]
    %v161 = vld [vmem:[%s3 + $0x38] sm:$0xf]
    %v162 = vld [vmem:[%s3 + $0x3c] sm:$0xf]
    %v163 = vld [vmem:[%s4] sm:$0x1]
    %v165 = vperm.slane %v163, 0
    %v183 = vunpack.c.l.b16 %v147
    %v184 = vunpack.c.l.b16 %v148
    %v185 = vunpack.c.l.b16 %v149
    %v186 = vunpack.c.l.b16 %v150
    %v187 = vunpack.c.l.b16 %v151
    %v188 = vunpack.c.l.b16 %v152
    %v189 = vunpack.c.l.b16 %v153
    %v190 = vunpack.c.l.b16 %v154
    %v191 = vunpack.c.l.b16 %v155
    %v192 = vunpack.c.l.b16 %v156
    %v193 = vunpack.c.l.b16 %v157
    %v194 = vunpack.c.l.b16 %v158
    %v195 = vunpack.c.l.b16 %v159
    %v196 = vunpack.c.l.b16 %v160
    %v197 = vunpack.c.l.b16 %v161
    %v198 = vunpack.c.l.b16 %v162
    %v199 = vpack.c.b16 %v184, %v183
    %v200 = vpack.c.b16 %v186, %v185
    %v201 = vpack.c.b16 %v188, %v187
    %v202 = vpack.c.b16 %v190, %v189
    %v203 = vpack.c.b16 %v192, %v191
    %v204 = vpack.c.b16 %v194, %v193
    %v205 = vpack.c.b16 %v196, %v195
    %v206 = vpack.c.b16 %v198, %v197
    %215 = vmatpush.bf16.msra.mxu0 %v206
    %216 = vmatpush.bf16.msra.mxu0 %v205
    %217 = vmatpush.bf16.msra.mxu0 %v204
    %218 = vmatpush.bf16.msra.mxu0 %v203
    %219 = vmatpush.bf16.msra.mxu0 %v202
    %220 = vmatpush.bf16.msra.mxu0 %v201
    %221 = vmatpush.bf16.msra.mxu0 %v200
    %222 = vmatpush.bf16.msra.mxu0 %v199
    %223 = vmatmul.bf16.gmra.mxu0 %v146
    %v224 = vpop.f32.mrf.mxu0
    %v225 = vadd.f32 %v165, %v224
    %v226 = vpop.f32.mrf.mxu0
    %v227 = vadd.f32 %v165, %v226
    %228 = vdwg.mxu0
    %v229 = vadd.f32 %v225, %v21
    %v230 = vadd.f32 %v227, %v22
    %231 = vst [vmem:[#allocation2] sm:$0xff] %v229
    %232 = vst [vmem:[#allocation2 + $0x8] sm:$0xff] %v230
    // Predicated region
    $region22: #{resml.1} parent=1 // pred_check
      _
    $region23: #{resml.1} parent=1 // pred_check_branch
      %234 = sbr.rel (0) target = $region25
    $region24: #{resml.1} parent=1 // pred_region
      %236 = vsyncadd [#allocation3], 0
      %s237 = sshll.u32 [#allocation2], 4
      %s238 = int_to_ptr.vmem [resolvable:$true] %s237
      %s239 = sshll.u32 %s5, 4
      %s240 = int_to_ptr.hbm [resolvable:$true] %s239
      %245 = dma.vmem_to_hbm [thread:$0]  %s238, 256, %s240, [#allocation3], 128, 128, 8
    $region25: #{resml.1} parent=1 // pred_fallthru
      _
    // Predicated region
    $region26: #{resml.1} parent=1 // pred_check
      _
    $region27: #{resml.1} parent=1 // pred_check_branch
      %247 = sbr.rel (0) target = $region29
    $region28: #{resml.1} parent=1 // pred_region
      %249 = dma.done [#allocation3], 256
    $region29: #{resml.1} parent=1 // pred_fallthru
      _
    %250 = vsyncpa [#allocation3], 1

</llo_original>
